<compile_context>
chip_gen: v7x
topology: tpu7x:2x2x1
jax: 0.10.0
libtpu: 0.0.40
codegen_flags: <defaults>
</compile_context>

<pallas_src>
import functools

import jax
import jax.numpy as jnp
from jax.experimental import pallas as pl
from jax.experimental.pallas import tpu as pltpu

NUM_FEATURES = 115   # == len(features) in the reference script
H3 = 64              # third hidden layer width in the PyTorch module
H3_PAD = 128         # padded so the (tile, 64) activation is lane-dense


def _round_up(v, m):
    return -(-v // m) * m


def _mlp_kernel(x_ref, w1_ref, b1_ref, w2_ref, b2_ref, w3_ref, b3_ref,
                w4_ref, b4_ref, o_ref):
    """All four Linear(+ReLU) layers fused; one invocation per batch tile."""
    cdt = w1_ref.dtype  # MXU input dtype (bf16 by default; f32 for validation)

    # Raw f32 rows straight from the caller's (B, 115) array; cast on the VPU
    # here so the wrapper never materializes a padded/casted copy in HBM.
    x = x_ref[...].astype(cdt)                                        # (T, 115)

    h = jnp.dot(x, w1_ref[...], preferred_element_type=jnp.float32) + b1_ref[...]
    h = jnp.maximum(h, 0.0)                                           # (T, 128)

    h = jnp.dot(h.astype(cdt), w2_ref[...],
                preferred_element_type=jnp.float32) + b2_ref[...]
    h = jnp.maximum(h, 0.0)                                           # (T, 256)

    h = jnp.dot(h.astype(cdt), w3_ref[...],
                preferred_element_type=jnp.float32) + b3_ref[...]
    h = jnp.maximum(h, 0.0)                    # (T, 128); padded 64 cols are 0

    # Final 64->1 layer as a VPU multiply + cross-lane reduce (no N=1 matmul).
    o = jnp.sum(h * w4_ref[...], axis=-1, keepdims=True) + b4_ref[...]
    o_ref[...] = jnp.maximum(o, 0.0)


@functools.partial(jax.jit, static_argnames=("batch_tile", "compute_dtype"))
def aftershock_regressor(x, params, *, batch_tile=None,
                         compute_dtype=jnp.bfloat16):
    """x: (B, 115) float32. params: dict of weights/biases. Returns (B, 1) f32."""
    B, F = x.shape
    assert F == NUM_FEATURES

    # Static (trace-time) tile selection.
    if batch_tile is None:
        if B < 256:
            batch_tile = _round_up(B, 16)                # one resident tile
        elif B <= 4096:
            # Two tiles -> grid >= 2 so v7x's dual TensorCores both work.
            batch_tile = _round_up(_round_up(B, 2) // 2, 128)
        else:
            # Large batch: amortize per-grid-step overhead; multiple of 256.
            batch_tile = 2048

    # Only tiny batches get padded (cheap).  Otherwise rely on Pallas boundary
    # masking of the last partial block — no extra HBM pass over x.
    if B < batch_tile:
        x_in = jnp.pad(x, ((0, batch_tile - B), (0, 0)))
    else:
        x_in = x
    B_in = x_in.shape[0]
    grid = (pl.cdiv(B_in, batch_tile),)

    # Weights / biases (tiny): cast / pad once per call in the wrapper.
    w1 = params["w1"].astype(compute_dtype)                               # (115,128)
    b1 = params["b1"].astype(jnp.float32)                                 # (1,128)
    w2 = params["w2"].astype(compute_dtype)                               # (128,256)
    b2 = params["b2"].astype(jnp.float32)                                 # (1,256)
    w3 = jnp.pad(params["w3"], ((0, 0), (0, H3_PAD - H3))).astype(compute_dtype)  # (256,128)
    b3 = jnp.pad(params["b3"], ((0, 0), (0, H3_PAD - H3))).astype(jnp.float32)    # (1,128)
    w4 = jnp.pad(params["w4"].T, ((0, 0), (0, H3_PAD - H3))).astype(jnp.float32)  # (1,128)
    b4 = params["b4"].astype(jnp.float32)                                 # (1,1)

    # Weights/biases are tiny and constant-indexed: keep them fully resident.
    def resident(a):
        return pl.BlockSpec(a.shape, lambda i: (0,) * a.ndim)

    out = pl.pallas_call(
        _mlp_kernel,
        out_shape=jax.ShapeDtypeStruct((B_in, 1), jnp.float32),
        grid_spec=pltpu.PrefetchScalarGridSpec(
            num_scalar_prefetch=0,
            grid=grid,
            in_specs=[
                # Last dim == full array dim (115) -> legal block; cast in-kernel.
                pl.BlockSpec((batch_tile, NUM_FEATURES), lambda i: (i, 0)),
                resident(w1), resident(b1),
                resident(w2), resident(b2),
                resident(w3), resident(b3),
                resident(w4), resident(b4),
            ],
            out_specs=pl.BlockSpec((batch_tile, 1), lambda i: (i, 0)),
        ),
        compiler_params=pltpu.CompilerParams(
            dimension_semantics=("parallel",),
            vmem_limit_bytes=64 << 20),   # headroom for 2048-row tiles on v5e
    )(x_in, w1, b1, w2, b2, w3, b3, w4, b4)

    return out[:B]


def init_params(key):
    """Deterministic synthetic init matching nn.Linear shapes (W stored transposed)."""
    dims = [(NUM_FEATURES, 128), (128, 256), (256, H3), (H3, 1)]
    params = {}
    for idx, (fan_in, fan_out) in enumerate(dims, start=1):
        key, kw, kb = jax.random.split(key, 3)
        bound = 1.0 / (fan_in ** 0.5)  # PyTorch default uniform bound
        params[f"w{idx}"] = jax.random.uniform(
            kw, (fan_in, fan_out), jnp.float32, minval=-bound, maxval=bound)
        params[f"b{idx}"] = jax.random.uniform(
            kb, (1, fan_out), jnp.float32, minval=-bound, maxval=bound)
    return params


def _reference_bf16(x, params):
    """Pure-JAX reference with the same bf16-matmul / f32-accumulate semantics."""
    def mm(a, w):
        return jnp.dot(a.astype(jnp.bfloat16), w.astype(jnp.bfloat16),
                       preferred_element_type=jnp.float32)
    h = jnp.maximum(mm(x, params["w1"]) + params["b1"], 0.0)
    h = jnp.maximum(mm(h, params["w2"]) + params["b2"], 0.0)
    h = jnp.maximum(mm(h, params["w3"]) + params["b3"], 0.0)
    o = jnp.dot(h, params["w4"], preferred_element_type=jnp.float32) + params["b4"]
    return jnp.maximum(o, 0.0)


def _reference_f32(x, params):
    """Pure-JAX full-precision reference (matches the f32 PyTorch model)."""
    hp = jax.lax.Precision.HIGHEST
    h = jnp.maximum(jnp.dot(x, params["w1"], precision=hp) + params["b1"], 0.0)
    h = jnp.maximum(jnp.dot(h, params["w2"], precision=hp) + params["b2"], 0.0)
    h = jnp.maximum(jnp.dot(h, params["w3"], precision=hp) + params["b3"], 0.0)
    o = jnp.dot(h, params["w4"], precision=hp) + params["b4"]
    return jnp.maximum(o, 0.0)


if __name__ == "__main__":
    key = jax.random.PRNGKey(0)
    key, kx1, kx2 = jax.random.split(key, 3)
    params = init_params(key)

    # 1) Small batch: single resident tile (grid = (1,)), wrapper batch pad.
    x_small = jax.random.normal(kx1, (16, NUM_FEATURES), jnp.float32)
    out_s = jax.block_until_ready(aftershock_regressor(x_small, params))
    ref_s = _reference_bf16(x_small, params)
    assert out_s.shape == (16, 1)
    assert jnp.allclose(out_s, ref_s, atol=1e-3, rtol=1e-3), "small-batch mismatch"

    # 2) Medium batch, default tiling: two tiles (v7x dual-TC path) with a
    #    ragged last block handled by boundary masking (no wrapper padding).
    x_med = jax.random.normal(kx2, (600, NUM_FEATURES), jnp.float32)
    out_m = jax.block_until_ready(aftershock_regressor(x_med, params))
    ref_m = _reference_bf16(x_med, params)
    assert out_m.shape == (600, 1)
    assert jnp.allclose(out_m, ref_m, atol=1e-3, rtol=1e-3), "medium-batch mismatch"

    # 3) Explicit small tile -> grid = (3,) pipelined path with a partial block.
    out_t = jax.block_until_ready(
        aftershock_regressor(x_med, params, batch_tile=256))
    assert jnp.allclose(out_t, ref_m, atol=1e-3, rtol=1e-3), "tiled-path mismatch"

    # 4) Full-f32 validation vs an f32 reference (review correctness concern).
    out_f = jax.block_until_ready(
        aftershock_regressor(x_med, params, compute_dtype=jnp.float32))
    ref_f = _reference_f32(x_med, params)
    assert jnp.allclose(out_f, ref_f, atol=5e-3, rtol=5e-3), "f32-path mismatch"

    print("KERNEL_OK")
</pallas_src>

<mosaic_0001>
module attributes {stable_mosaic.version = 11 : i64} {
  func.func @_mlp_kernel(%arg0: i32, %arg1: memref<16x115xf32, #tpu.memory_space<vmem>>, %arg2: memref<115x128xbf16, #tpu.memory_space<vmem>>, %arg3: memref<1x128xf32, #tpu.memory_space<vmem>>, %arg4: memref<128x256xbf16, #tpu.memory_space<vmem>>, %arg5: memref<1x256xf32, #tpu.memory_space<vmem>>, %arg6: memref<256x128xbf16, #tpu.memory_space<vmem>>, %arg7: memref<1x128xf32, #tpu.memory_space<vmem>>, %arg8: memref<1x128xf32, #tpu.memory_space<vmem>>, %arg9: memref<1x1xf32, #tpu.memory_space<vmem>>, %arg10: memref<16x1xf32, #tpu.memory_space<vmem>>) attributes {dimension_semantics = [#tpu.dimension_semantics<parallel>], iteration_bounds = array<i64: 1>, scalar_prefetch = 0 : i64, scratch_operands = 0 : i64, tpu.core_type = #tpu.core_type<tc>, window_params = [{transform_indices = @transform_0, window_bounds = array<i64: 16, 115>}, {pipeline_mode = #tpu.pipeline_mode<synchronous>, transform_indices = @transform_1, window_bounds = array<i64: 115, 128>}, {pipeline_mode = #tpu.pipeline_mode<synchronous>, transform_indices = @transform_2, window_bounds = array<i64: 1, 128>}, {pipeline_mode = #tpu.pipeline_mode<synchronous>, transform_indices = @transform_3, window_bounds = array<i64: 128, 256>}, {pipeline_mode = #tpu.pipeline_mode<synchronous>, transform_indices = @transform_4, window_bounds = array<i64: 1, 256>}, {pipeline_mode = #tpu.pipeline_mode<synchronous>, transform_indices = @transform_5, window_bounds = array<i64: 256, 128>}, {pipeline_mode = #tpu.pipeline_mode<synchronous>, transform_indices = @transform_6, window_bounds = array<i64: 1, 128>}, {pipeline_mode = #tpu.pipeline_mode<synchronous>, transform_indices = @transform_7, window_bounds = array<i64: 1, 128>}, {pipeline_mode = #tpu.pipeline_mode<synchronous>, transform_indices = @transform_8, window_bounds = array<i64: 1, 1>}, {transform_indices = @transform_9, window_bounds = array<i64: 16, 1>}]} {
    %c0 = arith.constant 0 : index
    %c0_0 = arith.constant 0 : index
    %0 = vector.load %arg1[%c0, %c0_0] : memref<16x115xf32, #tpu.memory_space<vmem>>, vector<16x115xf32>
    %1 = arith.truncf %0 : vector<16x115xf32> to vector<16x115xbf16>
    %c0_1 = arith.constant 0 : index
    %c0_2 = arith.constant 0 : index
    %2 = vector.load %arg2[%c0_1, %c0_2] : memref<115x128xbf16, #tpu.memory_space<vmem>>, vector<115x128xbf16>
    %cst = arith.constant dense<0.000000e+00> : vector<16x128xf32>
    %3 = tpu.matmul %1, %2, %cst {dimension_numbers = #tpu.dot_dimension_numbers<[1], [0], [0], [1], [0, 0, 1, 1], [], []>} : vector<16x115xbf16>, vector<115x128xbf16>, vector<16x128xf32> -> vector<16x128xf32>
    %c0_3 = arith.constant 0 : index
    %c0_4 = arith.constant 0 : index
    %4 = vector.load %arg3[%c0_3, %c0_4] : memref<1x128xf32, #tpu.memory_space<vmem>>, vector<1x128xf32>
    %5 = vector.broadcast %4 : vector<1x128xf32> to vector<16x128xf32>
    %6 = arith.addf %3, %5 : vector<16x128xf32>
    %cst_5 = arith.constant 0.000000e+00 : f32
    %7 = vector.broadcast %cst_5 : f32 to vector<16x128xf32>
    %8 = arith.maximumf %6, %7 : vector<16x128xf32>
    %9 = arith.truncf %8 : vector<16x128xf32> to vector<16x128xbf16>
    %c0_6 = arith.constant 0 : index
    %c0_7 = arith.constant 0 : index
    %10 = vector.load %arg4[%c0_6, %c0_7] : memref<128x256xbf16, #tpu.memory_space<vmem>>, vector<128x256xbf16>
    %cst_8 = arith.constant dense<0.000000e+00> : vector<16x256xf32>
    %11 = tpu.matmul %9, %10, %cst_8 {dimension_numbers = #tpu.dot_dimension_numbers<[1], [0], [0], [1], [0, 0, 1, 1], [], []>} : vector<16x128xbf16>, vector<128x256xbf16>, vector<16x256xf32> -> vector<16x256xf32>
    %c0_9 = arith.constant 0 : index
    %c0_10 = arith.constant 0 : index
    %12 = vector.load %arg5[%c0_9, %c0_10] : memref<1x256xf32, #tpu.memory_space<vmem>>, vector<1x256xf32>
    %13 = vector.broadcast %12 : vector<1x256xf32> to vector<16x256xf32>
    %14 = arith.addf %11, %13 : vector<16x256xf32>
    %cst_11 = arith.constant 0.000000e+00 : f32
    %15 = vector.broadcast %cst_11 : f32 to vector<16x256xf32>
    %16 = arith.maximumf %14, %15 : vector<16x256xf32>
    %17 = arith.truncf %16 : vector<16x256xf32> to vector<16x256xbf16>
    %c0_12 = arith.constant 0 : index
    %c0_13 = arith.constant 0 : index
    %18 = vector.load %arg6[%c0_12, %c0_13] : memref<256x128xbf16, #tpu.memory_space<vmem>>, vector<256x128xbf16>
    %cst_14 = arith.constant dense<0.000000e+00> : vector<16x128xf32>
    %19 = tpu.matmul %17, %18, %cst_14 {dimension_numbers = #tpu.dot_dimension_numbers<[1], [0], [0], [1], [0, 0, 1, 1], [], []>} : vector<16x256xbf16>, vector<256x128xbf16>, vector<16x128xf32> -> vector<16x128xf32>
    %c0_15 = arith.constant 0 : index
    %c0_16 = arith.constant 0 : index
    %20 = vector.load %arg7[%c0_15, %c0_16] : memref<1x128xf32, #tpu.memory_space<vmem>>, vector<1x128xf32>
    %21 = vector.broadcast %20 : vector<1x128xf32> to vector<16x128xf32>
    %22 = arith.addf %19, %21 : vector<16x128xf32>
    %cst_17 = arith.constant 0.000000e+00 : f32
    %23 = vector.broadcast %cst_17 : f32 to vector<16x128xf32>
    %24 = arith.maximumf %22, %23 : vector<16x128xf32>
    %c0_18 = arith.constant 0 : index
    %c0_19 = arith.constant 0 : index
    %25 = vector.load %arg8[%c0_18, %c0_19] : memref<1x128xf32, #tpu.memory_space<vmem>>, vector<1x128xf32>
    %26 = vector.broadcast %25 : vector<1x128xf32> to vector<16x128xf32>
    %27 = arith.mulf %24, %26 : vector<16x128xf32>
    %cst_20 = arith.constant dense<0.000000e+00> : vector<16xf32>
    %28 = vector.multi_reduction <add>, %27, %cst_20 [1] : vector<16x128xf32> to vector<16xf32>
    %29 = vector.shape_cast %28 : vector<16xf32> to vector<16x1xf32>
    %c0_21 = arith.constant 0 : index
    %c0_22 = arith.constant 0 : index
    %30 = vector.load %arg9[%c0_21, %c0_22] : memref<1x1xf32, #tpu.memory_space<vmem>>, vector<1x1xf32>
    %31 = vector.broadcast %30 : vector<1x1xf32> to vector<16x1xf32>
    %32 = arith.addf %29, %31 : vector<16x1xf32>
    %cst_23 = arith.constant 0.000000e+00 : f32
    %33 = vector.broadcast %cst_23 : f32 to vector<16x1xf32>
    %34 = arith.maximumf %32, %33 : vector<16x1xf32>
    %c0_24 = arith.constant 0 : index
    %c0_25 = arith.constant 0 : index
    %35 = vector.load %arg10[%c0_24, %c0_25] : memref<16x1xf32, #tpu.memory_space<vmem>>, vector<16x1xf32>
    tpu.vector_store %arg10[%c0_24, %c0_25], %34 {strides = array<i32>} : memref<16x1xf32, #tpu.memory_space<vmem>>, vector<16x1xf32>,
    return
  }
  func.func @transform_0(%arg0: i32) -> (i32, i32) {
    %c0_i32 = arith.constant 0 : i32
    %c0_i32_0 = arith.constant 0 : i32
    return %arg0, %c0_i32 : i32, i32
  }
  func.func @transform_1(%arg0: i32) -> (i32, i32) {
    %c0_i32 = arith.constant 0 : i32
    %c0_i32_0 = arith.constant 0 : i32
    %c0_i32_1 = arith.constant 0 : i32
    return %c0_i32, %c0_i32_0 : i32, i32
  }
  func.func @transform_2(%arg0: i32) -> (i32, i32) {
    %c0_i32 = arith.constant 0 : i32
    %c0_i32_0 = arith.constant 0 : i32
    %c0_i32_1 = arith.constant 0 : i32
    return %c0_i32, %c0_i32_0 : i32, i32
  }
  func.func @transform_3(%arg0: i32) -> (i32, i32) {
    %c0_i32 = arith.constant 0 : i32
    %c0_i32_0 = arith.constant 0 : i32
    %c0_i32_1 = arith.constant 0 : i32
    return %c0_i32, %c0_i32_0 : i32, i32
  }
  func.func @transform_4(%arg0: i32) -> (i32, i32) {
    %c0_i32 = arith.constant 0 : i32
    %c0_i32_0 = arith.constant 0 : i32
    %c0_i32_1 = arith.constant 0 : i32
    return %c0_i32, %c0_i32_0 : i32, i32
  }
  func.func @transform_5(%arg0: i32) -> (i32, i32) {
    %c0_i32 = arith.constant 0 : i32
    %c0_i32_0 = arith.constant 0 : i32
    %c0_i32_1 = arith.constant 0 : i32
    return %c0_i32, %c0_i32_0 : i32, i32
  }
  func.func @transform_6(%arg0: i32) -> (i32, i32) {
    %c0_i32 = arith.constant 0 : i32
    %c0_i32_0 = arith.constant 0 : i32
    %c0_i32_1 = arith.constant 0 : i32
    return %c0_i32, %c0_i32_0 : i32, i32
  }
  func.func @transform_7(%arg0: i32) -> (i32, i32) {
    %c0_i32 = arith.constant 0 : i32
    %c0_i32_0 = arith.constant 0 : i32
    %c0_i32_1 = arith.constant 0 : i32
    return %c0_i32, %c0_i32_0 : i32, i32
  }
  func.func @transform_8(%arg0: i32) -> (i32, i32) {
    %c0_i32 = arith.constant 0 : i32
    %c0_i32_0 = arith.constant 0 : i32
    %c0_i32_1 = arith.constant 0 : i32
    return %c0_i32, %c0_i32_0 : i32, i32
  }
  func.func @transform_9(%arg0: i32) -> (i32, i32) {
    %c0_i32 = arith.constant 0 : i32
    %c0_i32_0 = arith.constant 0 : i32
    return %arg0, %c0_i32 : i32, i32
  }
}

</mosaic_0001>

<llo_original>
// kernel: aftershock_regressor.1
$region0: #{aftershock_regressor.1}
  #allocation0 [shape = 'u32[]', space=smem, size = 0x4, offset = 0x4, fixed_abs, tag = 'smem constant byte address 0x4 - core index']
  #allocation1 [shape = 'u32[144,128]{1,0:T(1,128)}', space=vmem, size = 0x12000, scoped, tag = 'internal scratch']
  #allocation2 [shape = 'f32[1,1]{1,0:T(1,128)S(1)}', space=vmem, size = 0x200, scoped, tag = 'scoped memory for aftershock_regressor.1']
  %s0 = inlined_call_operand.hbm [shape: f32[16,115], index: 0, kind: input, shape index: {}]
  %s1 = inlined_call_operand.hbm [shape: bf16[115,128], index: 1, kind: input, shape index: {}]
  %s2 = inlined_call_operand.hbm [shape: f32[1,128], index: 2, kind: input, shape index: {}]
  %s3 = inlined_call_operand.hbm [shape: bf16[128,256], index: 3, kind: input, shape index: {}]
  %s4 = inlined_call_operand.hbm [shape: f32[1,256], index: 4, kind: input, shape index: {}]
  %s5 = inlined_call_operand.hbm [shape: bf16[256,128], index: 5, kind: input, shape index: {}]
  %s6 = inlined_call_operand.hbm [shape: f32[1,128], index: 6, kind: input, shape index: {}]
  %s7 = inlined_call_operand.hbm [shape: f32[1,128], index: 7, kind: input, shape index: {}]
  %s8 = inlined_call_operand.<no memory space> [shape: f32[1,1], index: 8, kind: input, shape index: {}]
  %s9 = inlined_call_operand.hbm [shape: f32[16,1], index: 9, kind: output, shape index: {}]
  %s10 = sld [smem:[#allocation0]]
  $region78: #{aftershock_regressor.1} parent=0
    _
  %s12 = ssub.s32 1, %s10
  %s13 = scalar_select 0, %s12, %s10
  %v14 = vstv %s8
  %15 = vst [vmem:[#allocation2] sm:$0x1] %v14
  $region1: #{aftershock_regressor.1} parent=0
    #allocation3 [shape = 'u8[8192]{0}', space=vmem, size = 0x2000, scoped, tag = 'input window, operand 0, single buffered']
    #allocation4 [shape = 's32[1]{0}', space=sflag, size = 0x4, scoped, tag = 'scoped memory for aftershock_regressor.1']
    #allocation5 [shape = 's32[1]{0}', space=sflag, size = 0x4, scoped, tag = 'scoped memory for aftershock_regressor.1']
    #allocation6 [shape = 'u8[30720]{0}', space=vmem, size = 0x7800, scoped, tag = 'input window, operand 1, single buffered']
    #allocation7 [shape = 's32[1]{0}', space=sflag, size = 0x4, scoped, tag = 'scoped memory for aftershock_regressor.1']
    #allocation8 [shape = 'u8[512]{0}', space=vmem, size = 0x400, scoped, tag = 'input window, operand 2, single buffered']
    #allocation9 [shape = 'u8[65536]{0}', space=vmem, size = 0x10000, scoped, tag = 'input window, operand 3, single buffered']
    #allocation10 [shape = 's32[1]{0}', space=sflag, size = 0x4, scoped, tag = 'scoped memory for aftershock_regressor.1']
    #allocation11 [shape = 'u8[1024]{0}', space=vmem, size = 0x400, scoped, tag = 'input window, operand 4, single buffered']
    #allocation12 [shape = 'u8[65536]{0}', space=vmem, size = 0x10000, scoped, tag = 'input window, operand 5, single buffered']
    #allocation13 [shape = 's32[1]{0}', space=sflag, size = 0x4, scoped, tag = 'scoped memory for aftershock_regressor.1']
    #allocation14 [shape = 'u8[512]{0}', space=vmem, size = 0x400, scoped, tag = 'input window, operand 6, single buffered']
    #allocation15 [shape = 'u8[512]{0}', space=vmem, size = 0x400, scoped, tag = 'input window, operand 7, single buffered']
    #allocation16 [shape = 's32[1]{0}', space=sflag, size = 0x4, scoped, tag = 'scoped memory for aftershock_regressor.1']
    #allocation17 [shape = 'u8[8192]{0}', space=vmem, size = 0x2000, scoped, tag = 'output window, operand 0, single buffered']
    %16 = vsyncpa [#allocation4], 0
    %17 = vsyncpa [#allocation7], 0
    %18 = vsyncpa [#allocation10], 0
    %19 = vsyncpa [#allocation13], 0
    %20 = vsyncpa [#allocation16], 0
    %21 = vsyncpa [#allocation5], 0
    // Predicated region
    $region2: #{aftershock_regressor.1} parent=1 // pred_check
      _
    $region3: #{aftershock_regressor.1} parent=1 // pred_check_branch
      %23 = sbr.rel (0) target = $region5
    $region4: #{aftershock_regressor.1} parent=1 // pred_region
      %s25 = ssub.s32 256, 256
      %26 = vsyncadd [#allocation4], %s25
      %s27 = sshll.u32 [#allocation3], 4
      %s28 = int_to_ptr.vmem [resolvable:$true] %s27
      %33 = dma.hbm_to_vmem [thread:$0]  %s0, 256, %s28, [#allocation4], 128, 128, 8
    $region5: #{aftershock_regressor.1} parent=1 // pred_fallthru
      _
    // Predicated region
    $region6: #{aftershock_regressor.1} parent=1 // pred_check
      _
    $region7: #{aftershock_regressor.1} parent=1 // pred_check_branch
      %35 = sbr.rel (0) target = $region9
    $region8: #{aftershock_regressor.1} parent=1 // pred_region
      %s37 = ssub.s32 960, 960
      %38 = vsyncadd [#allocation7], %s37
      %s39 = sshll.u32 [#allocation6], 4
      %s40 = int_to_ptr.vmem [resolvable:$true] %s39
      %45 = dma.hbm_to_vmem [thread:$0]  %s1, 960, %s40, [#allocation7], 64, 64, 4
    $region9: #{aftershock_regressor.1} parent=1 // pred_fallthru
      _
    // Predicated region
    $region10: #{aftershock_regressor.1} parent=1 // pred_check
      _
    $region11: #{aftershock_regressor.1} parent=1 // pred_check_branch
      %47 = sbr.rel (0) target = $region13
    $region12: #{aftershock_regressor.1} parent=1 // pred_region
      %s49 = ssub.s32 16, 16
      %50 = vsyncadd [#allocation7], %s49
      %s52 = sshll.u32 [#allocation8], 4
      %s53 = int_to_ptr.vmem [resolvable:$true] %s52
      %55 = dma.hbm_to_vmem [thread:$0]  %s2, 16, %s53, [#allocation7]
    $region13: #{aftershock_regressor.1} parent=1 // pred_fallthru
      _
    // Predicated region
    $region14: #{aftershock_regressor.1} parent=1 // pred_check
      _
    $region15: #{aftershock_regressor.1} parent=1 // pred_check_branch
      %57 = sbr.rel (0) target = $region17
    $region16: #{aftershock_regressor.1} parent=1 // pred_region
      %s59 = ssub.s32 2048, 2048
      %60 = vsyncadd [#allocation10], %s59
      %s61 = sshll.u32 [#allocation9], 4
      %s62 = int_to_ptr.vmem [resolvable:$true] %s61
      %67 = dma.hbm_to_vmem [thread:$0]  %s3, 2048, %s62, [#allocation10], 128, 128, 8
    $region17: #{aftershock_regressor.1} parent=1 // pred_fallthru
      _
    // Predicated region
    $region18: #{aftershock_regressor.1} parent=1 // pred_check
      _
    $region19: #{aftershock_regressor.1} parent=1 // pred_check_branch
      %69 = sbr.rel (0) target = $region21
    $region20: #{aftershock_regressor.1} parent=1 // pred_region
      %s71 = ssub.s32 32, 32
      %72 = vsyncadd [#allocation10], %s71
      %s74 = sshll.u32 [#allocation11], 4
      %s75 = int_to_ptr.vmem [resolvable:$true] %s74
      %77 = dma.hbm_to_vmem [thread:$0]  %s4, 32, %s75, [#allocation10]
    $region21: #{aftershock_regressor.1} parent=1 // pred_fallthru
      _
    // Predicated region
    $region22: #{aftershock_regressor.1} parent=1 // pred_check
      _
    $region23: #{aftershock_regressor.1} parent=1 // pred_check_branch
      %79 = sbr.rel (0) target = $region25
    $region24: #{aftershock_regressor.1} parent=1 // pred_region
      %s81 = ssub.s32 2048, 2048
      %82 = vsyncadd [#allocation13], %s81
      %s83 = sshll.u32 [#allocation12], 4
      %s84 = int_to_ptr.vmem [resolvable:$true] %s83
      %89 = dma.hbm_to_vmem [thread:$0]  %s5, 2048, %s84, [#allocation13], 64, 64, 4
    $region25: #{aftershock_regressor.1} parent=1 // pred_fallthru
      _
    // Predicated region
    $region26: #{aftershock_regressor.1} parent=1 // pred_check
      _
    $region27: #{aftershock_regressor.1} parent=1 // pred_check_branch
      %91 = sbr.rel (0) target = $region29
    $region28: #{aftershock_regressor.1} parent=1 // pred_region
      %s93 = ssub.s32 16, 16
      %94 = vsyncadd [#allocation13], %s93
      %s96 = sshll.u32 [#allocation14], 4
      %s97 = int_to_ptr.vmem [resolvable:$true] %s96
      %99 = dma.hbm_to_vmem [thread:$0]  %s6, 16, %s97, [#allocation13]
    $region29: #{aftershock_regressor.1} parent=1 // pred_fallthru
      _
    // Predicated region
    $region30: #{aftershock_regressor.1} parent=1 // pred_check
      _
    $region31: #{aftershock_regressor.1} parent=1 // pred_check_branch
      %101 = sbr.rel (0) target = $region33
    $region32: #{aftershock_regressor.1} parent=1 // pred_region
      %s103 = ssub.s32 16, 16
      %104 = vsyncadd [#allocation16], %s103
      %s106 = sshll.u32 [#allocation15], 4
      %s107 = int_to_ptr.vmem [resolvable:$true] %s106
      %109 = dma.hbm_to_vmem [thread:$0]  %s7, 16, %s107, [#allocation16]
    $region33: #{aftershock_regressor.1} parent=1 // pred_fallthru
      _
    // Predicated region
    $region34: #{aftershock_regressor.1} parent=1 // pred_check
      _
    $region35: #{aftershock_regressor.1} parent=1 // pred_check_branch
      %111 = sbr.rel (0) target = $region37
    $region36: #{aftershock_regressor.1} parent=1 // pred_region
      _
    $region37: #{aftershock_regressor.1} parent=1 // pred_fallthru
      _
    // Predicated region
    $region38: #{aftershock_regressor.1} parent=1 // pred_check
      _
    $region39: #{aftershock_regressor.1} parent=1 // pred_check_branch
      %113 = sbr.rel (0) target = $region41
    $region40: #{aftershock_regressor.1} parent=1 // pred_region
      %114 = dma.done [#allocation4], 256
    $region41: #{aftershock_regressor.1} parent=1 // pred_fallthru
      _
    // Predicated region
    $region42: #{aftershock_regressor.1} parent=1 // pred_check
      _
    $region43: #{aftershock_regressor.1} parent=1 // pred_check_branch
      %116 = sbr.rel (0) target = $region45
    $region44: #{aftershock_regressor.1} parent=1 // pred_region
      %117 = dma.done [#allocation7], 960
    $region45: #{aftershock_regressor.1} parent=1 // pred_fallthru
      _
    // Predicated region
    $region46: #{aftershock_regressor.1} parent=1 // pred_check
      _
    $region47: #{aftershock_regressor.1} parent=1 // pred_check_branch
      %119 = sbr.rel (0) target = $region49
    $region48: #{aftershock_regressor.1} parent=1 // pred_region
      %120 = dma.done [#allocation7], 16
    $region49: #{aftershock_regressor.1} parent=1 // pred_fallthru
      _
    // Predicated region
    $region50: #{aftershock_regressor.1} parent=1 // pred_check
      _
    $region51: #{aftershock_regressor.1} parent=1 // pred_check_branch
      %122 = sbr.rel (0) target = $region53
    $region52: #{aftershock_regressor.1} parent=1 // pred_region
      %123 = dma.done [#allocation10], 2048
    $region53: #{aftershock_regressor.1} parent=1 // pred_fallthru
      _
    // Predicated region
    $region54: #{aftershock_regressor.1} parent=1 // pred_check
      _
    $region55: #{aftershock_regressor.1} parent=1 // pred_check_branch
      %125 = sbr.rel (0) target = $region57
    $region56: #{aftershock_regressor.1} parent=1 // pred_region
      %126 = dma.done [#allocation10], 32
    $region57: #{aftershock_regressor.1} parent=1 // pred_fallthru
      _
    // Predicated region
    $region58: #{aftershock_regressor.1} parent=1 // pred_check
      _
    $region59: #{aftershock_regressor.1} parent=1 // pred_check_branch
      %128 = sbr.rel (0) target = $region61
    $region60: #{aftershock_regressor.1} parent=1 // pred_region
      %129 = dma.done [#allocation13], 2048
    $region61: #{aftershock_regressor.1} parent=1 // pred_fallthru
      _
    // Predicated region
    $region62: #{aftershock_regressor.1} parent=1 // pred_check
      _
    $region63: #{aftershock_regressor.1} parent=1 // pred_check_branch
      %131 = sbr.rel (0) target = $region65
    $region64: #{aftershock_regressor.1} parent=1 // pred_region
      %132 = dma.done [#allocation13], 16
    $region65: #{aftershock_regressor.1} parent=1 // pred_fallthru
      _
    // Predicated region
    $region66: #{aftershock_regressor.1} parent=1 // pred_check
      _
    $region67: #{aftershock_regressor.1} parent=1 // pred_check_branch
      %134 = sbr.rel (0) target = $region69
    $region68: #{aftershock_regressor.1} parent=1 // pred_region
      %135 = dma.done [#allocation16], 16
    $region69: #{aftershock_regressor.1} parent=1 // pred_fallthru
      _
    %v137 = vld [vmem:[#allocation3] sm:$0xff]
    %v138 = vld [vmem:[#allocation3 + $0x8] sm:$0xff]
    %v139 = vpack.c.bf16 %v138, %v137
    %v140 = vld [vmem:[#allocation6] sm:$0xf]
    %v141 = vld [vmem:[#allocation6 + $0x4] sm:$0xf]
    %v142 = vld [vmem:[#allocation6 + $0x8] sm:$0xf]
    %v143 = vld [vmem:[#allocation6 + $0xc] sm:$0xf]
    %v144 = vld [vmem:[#allocation6 + $0x10] sm:$0xf]
    %v145 = vld [vmem:[#allocation6 + $0x14] sm:$0xf]
    %v146 = vld [vmem:[#allocation6 + $0x18] sm:$0xf]
    %v147 = vld [vmem:[#allocation6 + $0x1c] sm:$0xf]
    %v148 = vld [vmem:[#allocation6 + $0x20] sm:$0xf]
    %v149 = vld [vmem:[#allocation6 + $0x24] sm:$0xf]
    %v150 = vld [vmem:[#allocation6 + $0x28] sm:$0xf]
    %v151 = vld [vmem:[#allocation6 + $0x2c] sm:$0xf]
    %v152 = vld [vmem:[#allocation6 + $0x30] sm:$0xf]
    %v153 = vld [vmem:[#allocation6 + $0x34] sm:$0xf]
    %v154 = vld [vmem:[#allocation6 + $0x38] sm:$0x3]
    %v155 = vld [vmem:[#allocation8] sm:$0x1]
    %v157 = vlaneseq
    %v158 = vshrl.u32 %v157, 7
    %v159 = vsub.s32 0, %v158
    %v160 = vrot.slane %v155, %v159
    %v177 = vunpack.c.l.b16 %v140
    %v178 = vunpack.c.l.b16 %v141
    %v179 = vunpack.c.l.b16 %v142
    %v180 = vunpack.c.l.b16 %v143
    %v181 = vunpack.c.l.b16 %v144
    %v182 = vunpack.c.l.b16 %v145
    %v183 = vunpack.c.l.b16 %v146
    %v184 = vunpack.c.l.b16 %v147
    %v185 = vunpack.c.l.b16 %v148
    %v186 = vunpack.c.l.b16 %v149
    %v187 = vunpack.c.l.b16 %v150
    %v188 = vunpack.c.l.b16 %v151
    %v189 = vunpack.c.l.b16 %v152
    %v190 = vunpack.c.l.b16 %v153
    %v191 = vunpack.c.l.b16 %v154
    %v192 = vpack.c.b16 %v178, %v177
    %v193 = vpack.c.b16 %v180, %v179
    %v194 = vpack.c.b16 %v182, %v181
    %v195 = vpack.c.b16 %v184, %v183
    %v196 = vpack.c.b16 %v186, %v185
    %v197 = vpack.c.b16 %v188, %v187
    %v198 = vpack.c.b16 %v190, %v189
    %v199 = vpack.c.b16 %v191, %v191
    %vm207 = vcmask 941056
    %v209 = vsel %vm207, %v139, 0
    %vm211 = vcmask 1040384
    %vm212 = vcmask 1041408
    %v213 = vsel %vm211, 4294967295, 65535
    %v214 = vsel %vm212, %v213, 0
    %v216 = vand.u32 %v199, %v214
    %218 = vmatprep.subr.bf16.mxu0 0
    %219 = vmatpush1.bf16.msra.mxu0 %v192
    %220 = vmatprep.subr.bf16.mxu0 0
    %221 = vmatpush1.bf16.msra.mxu0 %v193
    %222 = vmatprep.subr.bf16.mxu0 0
    %223 = vmatpush1.bf16.msra.mxu0 %v194
    %224 = vmatprep.subr.bf16.mxu0 0
    %225 = vmatpush1.bf16.msra.mxu0 %v195
    %226 = vmatprep.subr.bf16.mxu0 0
    %227 = vmatpush1.bf16.msra.mxu0 %v196
    %228 = vmatprep.subr.bf16.mxu0 0
    %229 = vmatpush1.bf16.msra.mxu0 %v197
    %230 = vmatprep.subr.bf16.mxu0 0
    %231 = vmatpush1.bf16.msra.mxu0 %v198
    %232 = vmatprep.subr.bf16.mxu0 0
    %233 = vmatpush1.bf16.msra.mxu0 %v216
    %234 = vmatprep.subr.bf16.mxu0 0
    %235 = vmatpush1.bf16.msra.mxu0 0
    %236 = vmatprep.subr.bf16.mxu0 0
    %237 = vmatpush1.bf16.msra.mxu0 0
    %238 = vmatprep.subr.bf16.mxu0 0
    %239 = vmatpush1.bf16.msra.mxu0 0
    %240 = vmatprep.subr.bf16.mxu0 0
    %241 = vmatpush1.bf16.msra.mxu0 0
    %242 = vmatprep.subr.bf16.mxu0 0
    %243 = vmatpush1.bf16.msra.mxu0 0
    %244 = vmatprep.subr.bf16.mxu0 0
    %245 = vmatpush1.bf16.msra.mxu0 0
    %246 = vmatprep.subr.bf16.mxu0 0
    %247 = vmatpush1.bf16.msra.mxu0 0
    %248 = vmatprep.subr.bf16.mxu0 0
    %249 = vmatpush1.bf16.msra.mxu0 0
    %250 = vmatprep.mubr.bf16.mxu0 0
    %251 = vmatmul.mubr.bf16.gmra.mrb[0].mxu0 %v209
    %v252 = vpop.f32.mrb[0].mxu0
    %v253 = vadd.f32 %v160, %v252
    %v254 = vpop.f32.mrb[0].mxu0
    %v255 = vpop.f32.mrb[0].mxu0
    %v256 = vadd.f32 %v160, %v255
    %v257 = vpop.f32.mrb[0].mxu0
    %258 = vdwg.mxu0
    %v259 = vmax.f32 %v253, 0.0
    %v260 = vmax.f32 %v256, 0.0
    %v261 = vpack.c.bf16 %v260, %v259
    %v262 = vld [vmem:[#allocation9] sm:$0xff]
    %v263 = vld [vmem:[#allocation9 + $0x8] sm:$0xff]
    %v264 = vld [vmem:[#allocation9 + $0x10] sm:$0xff]
    %v265 = vld [vmem:[#allocation9 + $0x18] sm:$0xff]
    %v266 = vld [vmem:[#allocation9 + $0x20] sm:$0xff]
    %v267 = vld [vmem:[#allocation9 + $0x28] sm:$0xff]
    %v268 = vld [vmem:[#allocation9 + $0x30] sm:$0xff]
    %v269 = vld [vmem:[#allocation9 + $0x38] sm:$0xff]
    %v270 = vld [vmem:[#allocation9 + $0x40] sm:$0xff]
    %v271 = vld [vmem:[#allocation9 + $0x48] sm:$0xff]
    %v272 = vld [vmem:[#allocation9 + $0x50] sm:$0xff]
    %v273 = vld [vmem:[#allocation9 + $0x58] sm:$0xff]
    %v274 = vld [vmem:[#allocation9 + $0x60] sm:$0xff]
    %v275 = vld [vmem:[#allocation9 + $0x68] sm:$0xff]
    %v276 = vld [vmem:[#allocation9 + $0x70] sm:$0xff]
    %v277 = vld [vmem:[#allocation9 + $0x78] sm:$0xff]
    %v278 = vld [vmem:[#allocation11] sm:$0x3]
    %v280 = vlaneseq
    %v281 = vshrl.u32 %v280, 7
    %v282 = vsub.s32 0, %v281
    %v283 = vrot.slane %v278, %v282
    %v284 = vlaneseq
    %v285 = vshrl.u32 %v284, 7
    %v286 = vsub.s32 1, %v285
    %v287 = vrot.slane %v278, %v286
    %v306 = vunpack.c.l.b16 %v262
    %v307 = vunpack.c.h.b16 %v262
    %v308 = vunpack.c.l.b16 %v263
    %v309 = vunpack.c.h.b16 %v263
    %v310 = vunpack.c.l.b16 %v264
    %v311 = vunpack.c.h.b16 %v264
    %v312 = vunpack.c.l.b16 %v265
    %v313 = vunpack.c.h.b16 %v265
    %v314 = vunpack.c.l.b16 %v266
    %v315 = vunpack.c.h.b16 %v266
    %v316 = vunpack.c.l.b16 %v267
    %v317 = vunpack.c.h.b16 %v267
    %v318 = vunpack.c.l.b16 %v268
    %v319 = vunpack.c.h.b16 %v268
    %v320 = vunpack.c.l.b16 %v269
    %v321 = vunpack.c.h.b16 %v269
    %v322 = vunpack.c.l.b16 %v270
    %v323 = vunpack.c.h.b16 %v270
    %v324 = vunpack.c.l.b16 %v271
    %v325 = vunpack.c.h.b16 %v271
    %v326 = vunpack.c.l.b16 %v272
    %v327 = vunpack.c.h.b16 %v272
    %v328 = vunpack.c.l.b16 %v273
    %v329 = vunpack.c.h.b16 %v273
    %v330 = vunpack.c.l.b16 %v274
    %v331 = vunpack.c.h.b16 %v274
    %v332 = vunpack.c.l.b16 %v275
    %v333 = vunpack.c.h.b16 %v275
    %v334 = vunpack.c.l.b16 %v276
    %v335 = vunpack.c.h.b16 %v276
    %v336 = vunpack.c.l.b16 %v277
    %v337 = vunpack.c.h.b16 %v277
    %v338 = vpack.c.b16 %v308, %v306
    %v339 = vpack.c.b16 %v309, %v307
    %v340 = vpack.c.b16 %v312, %v310
    %v341 = vpack.c.b16 %v313, %v311
    %v342 = vpack.c.b16 %v316, %v314
    %v343 = vpack.c.b16 %v317, %v315
    %v344 = vpack.c.b16 %v320, %v318
    %v345 = vpack.c.b16 %v321, %v319
    %v346 = vpack.c.b16 %v324, %v322
    %v347 = vpack.c.b16 %v325, %v323
    %v348 = vpack.c.b16 %v328, %v326
    %v349 = vpack.c.b16 %v329, %v327
    %v350 = vpack.c.b16 %v332, %v330
    %v351 = vpack.c.b16 %v333, %v331
    %v352 = vpack.c.b16 %v336, %v334
    %v353 = vpack.c.b16 %v337, %v335
    %370 = vmatprep.subr.bf16.mxu0 %v339
    %371 = vmatpush1.bf16.msra.mxu0 %v338
    %372 = vmatprep.subr.bf16.mxu0 %v341
    %373 = vmatpush1.bf16.msra.mxu0 %v340
    %374 = vmatprep.subr.bf16.mxu0 %v343
    %375 = vmatpush1.bf16.msra.mxu0 %v342
    %376 = vmatprep.subr.bf16.mxu0 %v345
    %377 = vmatpush1.bf16.msra.mxu0 %v344
    %378 = vmatprep.subr.bf16.mxu0 %v347
    %379 = vmatpush1.bf16.msra.mxu0 %v346
    %380 = vmatprep.subr.bf16.mxu0 %v349
    %381 = vmatpush1.bf16.msra.mxu0 %v348
    %382 = vmatprep.subr.bf16.mxu0 %v351
    %383 = vmatpush1.bf16.msra.mxu0 %v350
    %384 = vmatprep.subr.bf16.mxu0 %v353
    %385 = vmatpush1.bf16.msra.mxu0 %v352
    %386 = vmatprep.subr.bf16.mxu0 0
    %387 = vmatpush1.bf16.msra.mxu0 0
    %388 = vmatprep.subr.bf16.mxu0 0
    %389 = vmatpush1.bf16.msra.mxu0 0
    %390 = vmatprep.subr.bf16.mxu0 0
    %391 = vmatpush1.bf16.msra.mxu0 0
    %392 = vmatprep.subr.bf16.mxu0 0
    %393 = vmatpush1.bf16.msra.mxu0 0
    %394 = vmatprep.subr.bf16.mxu0 0
    %395 = vmatpush1.bf16.msra.mxu0 0
    %396 = vmatprep.subr.bf16.mxu0 0
    %397 = vmatpush1.bf16.msra.mxu0 0
    %398 = vmatprep.subr.bf16.mxu0 0
    %399 = vmatpush1.bf16.msra.mxu0 0
    %400 = vmatprep.subr.bf16.mxu0 0
    %401 = vmatpush1.bf16.msra.mxu0 0
    %402 = vmatprep.mubr.bf16.mxu0 0
    %403 = vmatmul.mubr.bf16.gmra.mrb[0].mxu0 %v261
    %v404 = vpop.f32.mrb[0].mxu0
    %v405 = vadd.f32 %v283, %v404
    %v406 = vpop.f32.mrb[0].mxu0
    %v407 = vadd.f32 %v287, %v406
    %v408 = vpop.f32.mrb[0].mxu0
    %v409 = vadd.f32 %v283, %v408
    %v410 = vpop.f32.mrb[0].mxu0
    %v411 = vadd.f32 %v287, %v410
    %412 = vdwg.mxu0
    %v413 = vmax.f32 %v405, 0.0
    %v414 = vmax.f32 %v407, 0.0
    %v415 = vmax.f32 %v409, 0.0
    %v416 = vmax.f32 %v411, 0.0
    %v417 = vpack.c.bf16 %v415, %v413
    %v418 = vpack.c.bf16 %v416, %v414
    %v419 = vld [vmem:[#allocation12] sm:$0xf]
    %v420 = vld [vmem:[#allocation12 + $0x4] sm:$0xf]
    %v421 = vld [vmem:[#allocation12 + $0x8] sm:$0xf]
    %v422 = vld [vmem:[#allocation12 + $0xc] sm:$0xf]
    %v423 = vld [vmem:[#allocation12 + $0x10] sm:$0xf]
    %v424 = vld [vmem:[#allocation12 + $0x14] sm:$0xf]
    %v425 = vld [vmem:[#allocation12 + $0x18] sm:$0xf]
    %v426 = vld [vmem:[#allocation12 + $0x1c] sm:$0xf]
    %v427 = vld [vmem:[#allocation12 + $0x20] sm:$0xf]
    %v428 = vld [vmem:[#allocation12 + $0x24] sm:$0xf]
    %v429 = vld [vmem:[#allocation12 + $0x28] sm:$0xf]
    %v430 = vld [vmem:[#allocation12 + $0x2c] sm:$0xf]
    %v431 = vld [vmem:[#allocation12 + $0x30] sm:$0xf]
    %v432 = vld [vmem:[#allocation12 + $0x34] sm:$0xf]
    %v433 = vld [vmem:[#allocation12 + $0x38] sm:$0xf]
    %v434 = vld [vmem:[#allocation12 + $0x3c] sm:$0xf]
    %v435 = vld [vmem:[#allocation12 + $0x40] sm:$0xf]
    %v436 = vld [vmem:[#allocation12 + $0x44] sm:$0xf]
    %v437 = vld [vmem:[#allocation12 + $0x48] sm:$0xf]
    %v438 = vld [vmem:[#allocation12 + $0x4c] sm:$0xf]
    %v439 = vld [vmem:[#allocation12 + $0x50] sm:$0xf]
    %v440 = vld [vmem:[#allocation12 + $0x54] sm:$0xf]
    %v441 = vld [vmem:[#allocation12 + $0x58] sm:$0xf]
    %v442 = vld [vmem:[#allocation12 + $0x5c] sm:$0xf]
    %v443 = vld [vmem:[#allocation12 + $0x60] sm:$0xf]
    %v444 = vld [vmem:[#allocation12 + $0x64] sm:$0xf]
    %v445 = vld [vmem:[#allocation12 + $0x68] sm:$0xf]
    %v446 = vld [vmem:[#allocation12 + $0x6c] sm:$0xf]
    %v447 = vld [vmem:[#allocation12 + $0x70] sm:$0xf]
    %v448 = vld [vmem:[#allocation12 + $0x74] sm:$0xf]
    %v449 = vld [vmem:[#allocation12 + $0x78] sm:$0xf]
    %v450 = vld [vmem:[#allocation12 + $0x7c] sm:$0xf]
    %v451 = vld [vmem:[#allocation14] sm:$0x1]
    %v453 = vlaneseq
    %v454 = vshrl.u32 %v453, 7
    %v455 = vsub.s32 0, %v454
    %v456 = vrot.slane %v451, %v455
    %v490 = vunpack.c.l.b16 %v419
    %v491 = vunpack.c.l.b16 %v420
    %v492 = vunpack.c.l.b16 %v421
    %v493 = vunpack.c.l.b16 %v422
    %v494 = vunpack.c.l.b16 %v423
    %v495 = vunpack.c.l.b16 %v424
    %v496 = vunpack.c.l.b16 %v425
    %v497 = vunpack.c.l.b16 %v426
    %v498 = vunpack.c.l.b16 %v427
    %v499 = vunpack.c.l.b16 %v428
    %v500 = vunpack.c.l.b16 %v429
    %v501 = vunpack.c.l.b16 %v430
    %v502 = vunpack.c.l.b16 %v431
    %v503 = vunpack.c.l.b16 %v432
    %v504 = vunpack.c.l.b16 %v433
    %v505 = vunpack.c.l.b16 %v434
    %v506 = vunpack.c.l.b16 %v435
    %v507 = vunpack.c.l.b16 %v436
    %v508 = vunpack.c.l.b16 %v437
    %v509 = vunpack.c.l.b16 %v438
    %v510 = vunpack.c.l.b16 %v439
    %v511 = vunpack.c.l.b16 %v440
    %v512 = vunpack.c.l.b16 %v441
    %v513 = vunpack.c.l.b16 %v442
    %v514 = vunpack.c.l.b16 %v443
    %v515 = vunpack.c.l.b16 %v444
    %v516 = vunpack.c.l.b16 %v445
    %v517 = vunpack.c.l.b16 %v446
    %v518 = vunpack.c.l.b16 %v447
    %v519 = vunpack.c.l.b16 %v448
    %v520 = vunpack.c.l.b16 %v449
    %v521 = vunpack.c.l.b16 %v450
    %v522 = vpack.c.b16 %v491, %v490
    %v523 = vpack.c.b16 %v493, %v492
    %v524 = vpack.c.b16 %v495, %v494
    %v525 = vpack.c.b16 %v497, %v496
    %v526 = vpack.c.b16 %v499, %v498
    %v527 = vpack.c.b16 %v501, %v500
    %v528 = vpack.c.b16 %v503, %v502
    %v529 = vpack.c.b16 %v505, %v504
    %v530 = vpack.c.b16 %v507, %v506
    %v531 = vpack.c.b16 %v509, %v508
    %v532 = vpack.c.b16 %v511, %v510
    %v533 = vpack.c.b16 %v513, %v512
    %v534 = vpack.c.b16 %v515, %v514
    %v535 = vpack.c.b16 %v517, %v516
    %v536 = vpack.c.b16 %v519, %v518
    %v537 = vpack.c.b16 %v521, %v520
    %554 = vmatprep.subr.bf16.mxu0 0
    %555 = vmatpush1.bf16.msra.mxu0 %v522
    %556 = vmatprep.subr.bf16.mxu0 0
    %557 = vmatpush1.bf16.msra.mxu0 %v523
    %558 = vmatprep.subr.bf16.mxu0 0
    %559 = vmatpush1.bf16.msra.mxu0 %v524
    %560 = vmatprep.subr.bf16.mxu0 0
    %561 = vmatpush1.bf16.msra.mxu0 %v525
    %562 = vmatprep.subr.bf16.mxu0 0
    %563 = vmatpush1.bf16.msra.mxu0 %v526
    %564 = vmatprep.subr.bf16.mxu0 0
    %565 = vmatpush1.bf16.msra.mxu0 %v527
    %566 = vmatprep.subr.bf16.mxu0 0
    %567 = vmatpush1.bf16.msra.mxu0 %v528
    %568 = vmatprep.subr.bf16.mxu0 0
    %569 = vmatpush1.bf16.msra.mxu0 %v529
    %570 = vmatprep.subr.bf16.mxu0 0
    %571 = vmatpush1.bf16.msra.mxu0 %v530
    %572 = vmatprep.subr.bf16.mxu0 0
    %573 = vmatpush1.bf16.msra.mxu0 %v531
    %574 = vmatprep.subr.bf16.mxu0 0
    %575 = vmatpush1.bf16.msra.mxu0 %v532
    %576 = vmatprep.subr.bf16.mxu0 0
    %577 = vmatpush1.bf16.msra.mxu0 %v533
    %578 = vmatprep.subr.bf16.mxu0 0
    %579 = vmatpush1.bf16.msra.mxu0 %v534
    %580 = vmatprep.subr.bf16.mxu0 0
    %581 = vmatpush1.bf16.msra.mxu0 %v535
    %582 = vmatprep.subr.bf16.mxu0 0
    %583 = vmatpush1.bf16.msra.mxu0 %v536
    %584 = vmatprep.subr.bf16.mxu0 0
    %585 = vmatpush1.bf16.msra.mxu0 %v537
    %586 = vmatprep.mubr.bf16.mxu0 %v418
    %587 = vmatmul.mubr.bf16.gmra.mrb[0].mxu0 %v417
    %v588 = vpop.f32.mrb[0].mxu0
    %v589 = vadd.f32 %v456, %v588
    %v590 = vpop.f32.mrb[0].mxu0
    %v591 = vpop.f32.mrb[0].mxu0
    %v592 = vadd.f32 %v456, %v591
    %v593 = vpop.f32.mrb[0].mxu0
    %594 = vdwg.mxu0
    %v595 = vmax.f32 %v589, 0.0
    %v596 = vmax.f32 %v592, 0.0
    %v597 = vld [vmem:[#allocation15] sm:$0x1]
    %v599 = vlaneseq
    %v600 = vshrl.u32 %v599, 7
    %v601 = vsub.s32 0, %v600
    %v602 = vrot.slane %v597, %v601
    %v604 = vmul.f32 %v595, %v602
    %v605 = vmul.f32 %v596, %v602
    %606 = vadd.xlane.f32.xlu0 %v604
    %v607 = vpop.xlane.xlu0 %606
    %608 = vadd.xlane.f32.xlu0 %v605
    %v609 = vpop.xlane.xlu0 %608
    %v610 = vld [vmem:[#allocation2] sm:$0x1]
    %v612 = vlaneseq
    %v613 = vshrl.u32 %v612, 7
    %v614 = vsub.s32 0, %v613
    %v615 = vrot.slane %v610, %v614
    %v617 = vadd.f32 %v607, %v615
    %v618 = vadd.f32 %v609, %v615
    %v619 = vmax.f32 %v617, 0.0
    %v620 = vmax.f32 %v618, 0.0
    %vm621 = vcmask 7168
    %622 = vst.msk [vmem:[#allocation17] sm:$0xff] %vm621, %v619
    %623 = vst.msk [vmem:[#allocation17 + $0x8] sm:$0xff] %vm621, %v620
    // Predicated region
    $region70: #{aftershock_regressor.1} parent=1 // pred_check
      _
    $region71: #{aftershock_regressor.1} parent=1 // pred_check_branch
      %625 = sbr.rel (0) target = $region73
    $region72: #{aftershock_regressor.1} parent=1 // pred_region
      %s627 = ssub.s32 256, 256
      %628 = vsyncadd [#allocation5], %s627
      %s629 = sshll.u32 [#allocation17], 4
      %s630 = int_to_ptr.vmem [resolvable:$true] %s629
      %635 = dma.vmem_to_hbm [thread:$0]  %s630, 256, %s9, [#allocation5], 128, 128, 8
    $region73: #{aftershock_regressor.1} parent=1 // pred_fallthru
      _
    // Predicated region
    $region74: #{aftershock_regressor.1} parent=1 // pred_check
      _
    $region75: #{aftershock_regressor.1} parent=1 // pred_check_branch
      %637 = sbr.rel (0) target = $region77
    $region76: #{aftershock_regressor.1} parent=1 // pred_region
      %638 = dma.done [#allocation5], 256
    $region77: #{aftershock_regressor.1} parent=1 // pred_fallthru
      _
    %639 = vsyncpa [#allocation4], 1
    %640 = vsyncpa [#allocation7], 1
    %641 = vsyncpa [#allocation10], 1
    %642 = vsyncpa [#allocation13], 1
    %643 = vsyncpa [#allocation16], 1
    %644 = vsyncpa [#allocation5], 1

</llo_original>
